<compile_context>
chip_gen: v5e
topology: v5e:2x2
jax: 0.10.0
libtpu: 0.0.40
codegen_flags: <defaults>
</compile_context>

<pallas_src>
import math

import jax
import jax.numpy as jnp
from jax.experimental import pallas as pl
from jax.experimental.pallas import tpu as pltpu


_MIB = 1024 * 1024
_X_BUFFER_CAP = 12 * _MIB       # target per x buffer (~8-12 MiB blocks)
_VMEM_LIMIT_CAP = 112 * _MIB    # never request more scoped VMEM than this


def _round_up(x: int, m: int) -> int:
    return ((x + m - 1) // m) * m


def _hw_params():
    """Return (vmem_capacity_bytes, num_tensorcores) with conservative fallbacks."""
    vmem = 64 * _MIB            # v7x per-TC VMEM; safe default on every generation
    num_tc = 1
    try:
        info = pltpu.get_tpu_info()
        vmem = int(getattr(info, "vmem_capacity_bytes", vmem)) or vmem
    except Exception:
        pass
    try:
        dev = jax.devices()[0]
        kind = str(getattr(dev, "device_kind", "")).lower()
        cores = int(getattr(dev, "num_cores", 0) or getattr(dev, "core_count", 0) or 0)
        if cores > 1:
            num_tc = cores
        elif ("v4" in kind) or ("v5p" in kind) or ("v7" in kind) or ("7x" in kind):
            num_tc = 2          # megacore / dual-TC chips
    except Exception:
        pass
    return vmem, num_tc


def _balance_tile(extent: int, tile: int, unit: int, num_tc: int) -> int:
    """Shrink `tile` so cdiv(extent, tile) is a multiple of num_tc (v7x balance)."""
    if num_tc <= 1 or extent <= unit:
        return tile
    steps = pl.cdiv(extent, tile)
    target = max(num_tc, _round_up(steps, num_tc))
    new_tile = max(unit, _round_up(pl.cdiv(extent, target), unit))
    new_tile = min(new_tile, extent)
    if pl.cdiv(extent, new_tile) >= num_tc:
        return new_tile
    return tile


def _choose_tiles(rows, width, itemsize, out_itemsize, vmem_limit, num_tc):
    """Pick (tile_r, tile_w) using *padded* (sublane, 128-lane) VMEM footprints."""
    sub = max(8, 32 // itemsize)              # f32: 8, bf16: 16, int8/fp8: 32
    pad_w_full = _round_up(width, 128)
    usable = (vmem_limit * 3) // 4            # headroom for Mosaic internal scratch

    io_bytes = itemsize + out_itemsize        # x in + out share the tile shape
    row_bytes_in = pad_w_full * itemsize
    row_bytes_io = pad_w_full * io_bytes
    gamma_buf_full = 8 * pad_w_full * 4       # (1, width) fp32 gamma pads to 8 sublanes

    if 2 * sub * row_bytes_io + 2 * gamma_buf_full <= usable:
        # Full-width rows fit: single width tile, tile along rows.
        tile_w = width
        budget_r = ((usable - 2 * gamma_buf_full) // (2 * row_bytes_io)) // sub * sub
        cap_r = (_X_BUFFER_CAP // max(1, row_bytes_in)) // sub * sub
        tile_r = max(sub, min(budget_r, max(sub, cap_r)))
        tile_r = min(tile_r, rows)
        tile_r = _balance_tile(rows, tile_r, sub, num_tc)
    else:
        # Width is huge (nchw-style): one sublane group of rows, tile the lanes.
        tile_r = min(rows, sub)
        padded_r = _round_up(tile_r, sub)
        denom = 2 * padded_r * io_bytes + 2 * 8 * 4   # x in/out (2 bufs each) + gamma (2 bufs)
        budget_w = (usable // denom) // 128 * 128
        cap_w = (_X_BUFFER_CAP // max(1, padded_r * itemsize)) // 128 * 128
        tile_w = max(128, min(budget_w, max(128, cap_w)))
        tile_w = min(tile_w, width)
        tile_w = _balance_tile(width, tile_w, 128, num_tc)
    return tile_r, tile_w


def _layer_scale_kernel(gamma_ref, x_ref, o_ref):
    # gamma_ref is (1, tile_w) fp32 and broadcasts against the (tile_r, tile_w)
    # x block.  The kernel is HBM/DMA bound, so the fp32 upcast is free slack.
    o_ref[...] = (x_ref[...].astype(jnp.float32) * gamma_ref[...]).astype(o_ref.dtype)


def _layer_scale_2d(x2d, gamma_row, out_dtype, *, donate_x=False):
    """out = gamma_row * x2d with gamma_row (1, width) broadcast over rows."""
    rows, width = x2d.shape
    itemsize = x2d.dtype.itemsize
    out_itemsize = jnp.dtype(out_dtype).itemsize

    vmem_cap, num_tc = _hw_params()
    vmem_limit = min((vmem_cap * 7) // 8, _VMEM_LIMIT_CAP)
    tile_r, tile_w = _choose_tiles(rows, width, itemsize, out_itemsize, vmem_limit, num_tc)

    # Width tiles outer, row tiles inner: the gamma block index only changes on
    # the outer axis, so it is not re-fetched across the inner row sweep.
    grid = (pl.cdiv(width, tile_w), pl.cdiv(rows, tile_r))

    cost = pl.CostEstimate(
        flops=rows * width,
        transcendentals=0,
        bytes_accessed=rows * width * (itemsize + out_itemsize) + width * 4,
    )

    kwargs = {}
    if donate_x and x2d.dtype == jnp.dtype(out_dtype):
        # Caller must actually donate x (it is invalidated after the call).
        kwargs["input_output_aliases"] = {1: 0}

    return pl.pallas_call(
        _layer_scale_kernel,
        out_shape=jax.ShapeDtypeStruct((rows, width), out_dtype),
        grid_spec=pltpu.PrefetchScalarGridSpec(
            num_scalar_prefetch=0,
            grid=grid,
            in_specs=[
                pl.BlockSpec((1, tile_w), lambda j, i: (0, j)),        # gamma lane row
                pl.BlockSpec((tile_r, tile_w), lambda j, i: (i, j)),   # x
            ],
            out_specs=pl.BlockSpec((tile_r, tile_w), lambda j, i: (i, j)),
        ),
        compiler_params=pltpu.CompilerParams(
            dimension_semantics=("parallel", "parallel"),
            vmem_limit_bytes=int(vmem_limit),
        ),
        cost_estimate=cost,
        **kwargs,
    )(gamma_row, x2d)


class LayerScalePallas:
    """JAX/Pallas reimplementation of the PyTorch LayerScale module."""

    def __init__(self, chans: int, init_value: float = 1e-4, in_format: str = "nlc"):
        assert in_format in {"nlc", "nchw"}
        self.in_format = in_format
        self.chans = chans
        if in_format == "nlc":
            # matches nn.Parameter(torch.ones(chans) * init_value)
            self.gamma = jnp.ones((chans,), dtype=jnp.float32) * init_value
        else:
            # matches nn.Parameter(torch.ones((1, chans, 1, 1)) * init_value)
            self.gamma = jnp.ones((1, chans, 1, 1), dtype=jnp.float32) * init_value

    def __call__(self, x: jax.Array, *, donate_x: bool = False) -> jax.Array:
        # Output dtype follows torch type promotion (fp32 gamma * x).
        out_dtype = jnp.result_type(x.dtype, self.gamma.dtype)
        if self.in_format == "nlc":
            return self._forward_nlc(x, out_dtype, donate_x)
        return self._forward_nchw(x, out_dtype, donate_x)

    # -- helpers -------------------------------------------------------------
    @staticmethod
    def _lane_pack(period: int, total: int):
        """Fold `reps` gamma periods into one lane row so width % 128 == 0."""
        if period % 128 == 0:
            return period, 1
        packed = period * (128 // math.gcd(period, 128))   # lcm(period, 128)
        if total % packed == 0:
            return packed, packed // period
        return period, 1

    # ---- 'nlc': (N, L, C) ----------------------------------------------------
    def _forward_nlc(self, x, out_dtype, donate_x):
        N, L, C = x.shape
        assert C == self.chans
        width, reps = self._lane_pack(C, N * L * C)
        rows = (N * L * C) // width
        x2d = x.reshape(rows, width)                         # free contiguous reshape
        gamma_row = jnp.tile(self.gamma, reps).reshape(1, width)   # fp32 lane row
        out2d = _layer_scale_2d(x2d, gamma_row, out_dtype, donate_x=donate_x)
        return out2d.reshape(N, L, C)

    # ---- 'nchw': (N, C, H, W) -------------------------------------------------
    def _forward_nchw(self, x, out_dtype, donate_x):
        N, C, H, W = x.shape
        assert C == self.chans
        period = C * H * W
        width, reps = self._lane_pack(period, N * period)
        rows = (N * period) // width
        # Free reshape (no transpose): batch -> rows, (C,H,W) -> lanes.  Gamma
        # becomes a lane row with each channel value repeated H*W times, so the
        # store path stays lane-dense even when H*W is not a multiple of 128.
        x2d = x.reshape(rows, width)
        gamma_row = jnp.tile(
            jnp.repeat(self.gamma.reshape(C).astype(jnp.float32), H * W), reps
        ).reshape(1, width)
        out2d = _layer_scale_2d(x2d, gamma_row, out_dtype, donate_x=donate_x)
        return out2d.reshape(N, C, H, W)


if __name__ == "__main__":
    key = jax.random.PRNGKey(0)
    k1, k2 = jax.random.split(key)

    # 'nchw' format: x of shape (2, 4, 16, 16)
    x_nchw = jax.random.normal(k1, (2, 4, 16, 16), dtype=jnp.float32)
    ls_nchw = LayerScalePallas(chans=4, init_value=1e-4, in_format="nchw")
    out_nchw = jax.block_until_ready(ls_nchw(x_nchw))
    ref_nchw = ls_nchw.gamma * x_nchw
    assert out_nchw.shape == x_nchw.shape and out_nchw.dtype == ref_nchw.dtype
    assert jnp.allclose(out_nchw, ref_nchw, atol=1e-7, rtol=1e-6)

    # 'nlc' format: x of shape (2, 8, 32)
    x_nlc = jax.random.normal(k2, (2, 8, 32), dtype=jnp.float32)
    ls_nlc = LayerScalePallas(chans=32, init_value=1e-4, in_format="nlc")
    out_nlc = jax.block_until_ready(ls_nlc(x_nlc))
    ref_nlc = ls_nlc.gamma * x_nlc
    assert out_nlc.shape == x_nlc.shape and out_nlc.dtype == ref_nlc.dtype
    assert jnp.allclose(out_nlc, ref_nlc, atol=1e-7, rtol=1e-6)

    print("KERNEL_OK")
</pallas_src>

<mosaic_0001>
module attributes {stable_mosaic.version = 11 : i64} {
  func.func @_layer_scale_kernel(%arg0: i32, %arg1: i32, %arg2: memref<1x1024xf32, #tpu.memory_space<vmem>>, %arg3: memref<2x1024xf32, #tpu.memory_space<vmem>>, %arg4: memref<2x1024xf32, #tpu.memory_space<vmem>>) attributes {dimension_semantics = [#tpu.dimension_semantics<parallel>, #tpu.dimension_semantics<parallel>], iteration_bounds = array<i64: 1, 1>, scalar_prefetch = 0 : i64, scratch_operands = 0 : i64, tpu.core_type = #tpu.core_type<tc>, window_params = [{transform_indices = @transform_0, window_bounds = array<i64: 1, 1024>}, {transform_indices = @transform_1, window_bounds = array<i64: 2, 1024>}, {transform_indices = @transform_2, window_bounds = array<i64: 2, 1024>}]} {
    %c0 = arith.constant 0 : index
    %c0_0 = arith.constant 0 : index
    %0 = vector.load %arg3[%c0, %c0_0] : memref<2x1024xf32, #tpu.memory_space<vmem>>, vector<2x1024xf32>
    %c0_1 = arith.constant 0 : index
    %c0_2 = arith.constant 0 : index
    %1 = vector.load %arg2[%c0_1, %c0_2] : memref<1x1024xf32, #tpu.memory_space<vmem>>, vector<1x1024xf32>
    %2 = vector.broadcast %1 : vector<1x1024xf32> to vector<2x1024xf32>
    %3 = arith.mulf %0, %2 : vector<2x1024xf32>
    %c0_3 = arith.constant 0 : index
    %c0_4 = arith.constant 0 : index
    %4 = vector.load %arg4[%c0_3, %c0_4] : memref<2x1024xf32, #tpu.memory_space<vmem>>, vector<2x1024xf32>
    tpu.vector_store %arg4[%c0_3, %c0_4], %3 {strides = array<i32>} : memref<2x1024xf32, #tpu.memory_space<vmem>>, vector<2x1024xf32>,
    return
  }
  func.func @transform_0(%arg0: i32, %arg1: i32) -> (i32, i32) {
    %c0_i32 = arith.constant 0 : i32
    %c0_i32_0 = arith.constant 0 : i32
    return %c0_i32, %arg0 : i32, i32
  }
  func.func @transform_1(%arg0: i32, %arg1: i32) -> (i32, i32) {
    %c0_i32 = arith.constant 0 : i32
    return %arg1, %arg0 : i32, i32
  }
  func.func @transform_2(%arg0: i32, %arg1: i32) -> (i32, i32) {
    %c0_i32 = arith.constant 0 : i32
    return %arg1, %arg0 : i32, i32
  }
}

</mosaic_0001>

<llo_original>
// kernel: tpu_custom_call.1
$region0: #{tpu_custom_call.1}
  #allocation0 [shape = 'u32[]', space=smem, size = 0x4, offset = 0x4, fixed_abs, tag = 'smem constant byte address 0x4 - core index']
  #allocation1 [shape = 'u32[72,128]{1,0:T(1,128)}', space=vmem, size = 0x9000, scoped, tag = 'internal scratch']
  %s0 = inlined_call_operand.hbm [shape: f32[1,1024], index: 0, kind: input, shape index: {}]
  %s1 = inlined_call_operand.hbm [shape: f32[2,1024], index: 1, kind: input, shape index: {}]
  %s2 = inlined_call_operand.hbm [shape: f32[2,1024], index: 2, kind: output, shape index: {}]
  %s3 = sld [smem:[#allocation0]]
  $region26: #{tpu_custom_call.1} parent=0
    _
  %s5 = ssub.s32 1, %s3
  %s6 = scalar_select 0, %s5, %s3
  $region1: #{tpu_custom_call.1} parent=0
    #allocation2 [shape = 'u8[4096]{0}', space=vmem, size = 0x1000, scoped, tag = 'input window, operand 0, single buffered']
    #allocation3 [shape = 's32[1]{0}', space=sflag, size = 0x4, scoped, tag = 'scoped memory for tpu_custom_call.1']
    #allocation4 [shape = 's32[1]{0}', space=sflag, size = 0x4, scoped, tag = 'scoped memory for tpu_custom_call.1']
    #allocation5 [shape = 'u8[8192]{0}', space=vmem, size = 0x2000, scoped, tag = 'input window, operand 1, single buffered']
    #allocation6 [shape = 's32[1]{0}', space=sflag, size = 0x4, scoped, tag = 'scoped memory for tpu_custom_call.1']
    #allocation7 [shape = 'u8[8192]{0}', space=vmem, size = 0x2000, scoped, tag = 'output window, operand 0, single buffered']
    %7 = vsyncpa [#allocation3], 0
    %8 = vsyncpa [#allocation6], 0
    %9 = vsyncpa [#allocation4], 0
    // Predicated region
    $region2: #{tpu_custom_call.1} parent=1 // pred_check
      _
    $region3: #{tpu_custom_call.1} parent=1 // pred_check_branch
      %11 = sbr.rel (0) target = $region5
    $region4: #{tpu_custom_call.1} parent=1 // pred_region
      %13 = vsyncadd [#allocation3], 0
      %s15 = sshll.u32 %s0, 4
      %s16 = int_to_ptr.hbm [resolvable:$true] %s15
      %s17 = sshll.u32 [#allocation2], 4
      %s18 = int_to_ptr.vmem [resolvable:$true] %s17
      %20 = dma.hbm_to_vmem [thread:$0]  %s16, 128, %s18, [#allocation3]
    $region5: #{tpu_custom_call.1} parent=1 // pred_fallthru
      _
    // Predicated region
    $region6: #{tpu_custom_call.1} parent=1 // pred_check
      _
    $region7: #{tpu_custom_call.1} parent=1 // pred_check_branch
      %22 = sbr.rel (0) target = $region9
    $region8: #{tpu_custom_call.1} parent=1 // pred_region
      %24 = vsyncadd [#allocation6], 0
      %s26 = sshll.u32 %s1, 4
      %s27 = int_to_ptr.hbm [resolvable:$true] %s26
      %s28 = sshll.u32 [#allocation5], 4
      %s29 = int_to_ptr.vmem [resolvable:$true] %s28
      %31 = dma.hbm_to_vmem [thread:$0]  %s27, 256, %s29, [#allocation6]
    $region9: #{tpu_custom_call.1} parent=1 // pred_fallthru
      _
    // Predicated region
    $region10: #{tpu_custom_call.1} parent=1 // pred_check
      _
    $region11: #{tpu_custom_call.1} parent=1 // pred_check_branch
      %33 = sbr.rel (0) target = $region13
    $region12: #{tpu_custom_call.1} parent=1 // pred_region
      %35 = dma.done [#allocation3], 128
    $region13: #{tpu_custom_call.1} parent=1 // pred_fallthru
      _
    // Predicated region
    $region14: #{tpu_custom_call.1} parent=1 // pred_check
      _
    $region15: #{tpu_custom_call.1} parent=1 // pred_check_branch
      %37 = sbr.rel (0) target = $region17
    $region16: #{tpu_custom_call.1} parent=1 // pred_region
      %39 = dma.done [#allocation6], 256
    $region17: #{tpu_custom_call.1} parent=1 // pred_fallthru
      _
    %v40 = vld [vmem:[#allocation5] sm:$0xff]
    %v41 = vld [vmem:[#allocation5 + $0x8] sm:$0xff]
    %v42 = vld [vmem:[#allocation2] sm:$0xff]
    %v44 = vperm.slane %v42, 0
    %v45 = vperm.slane %v42, 1
    %v46 = vperm.slane %v42, 2
    %v47 = vperm.slane %v42, 3
    %v48 = vperm.slane %v42, 4
    %v49 = vperm.slane %v42, 5
    %v50 = vperm.slane %v42, 6
    %v51 = vperm.slane %v42, 7
    %v52 = vrot.slane %v45, 6
    %v53 = vrot.slane %v46, 4
    %v54 = vrot.slane %v47, 2
    %v55 = vrot.slane %v49, 6
    %v56 = vrot.slane %v50, 4
    %v57 = vrot.slane %v51, 2
    %vm58 = vcmask 1041408
    %v59 = vsel %vm58, %v44, %v52
    %vm60 = vcmask 1045508
    %v61 = vsel %vm60, %v53, %v54
    %vm62 = vcmask 1043456
    %v63 = vsel %vm62, %v59, %v61
    %v64 = vsel %vm58, %v48, %v55
    %v65 = vsel %vm60, %v56, %v57
    %v66 = vsel %vm62, %v64, %v65
    %v69 = vmul.f32 %v40, %v63
    %v70 = vmul.f32 %v41, %v66
    %71 = vst [vmem:[#allocation7] sm:$0xff] %v69
    %72 = vst [vmem:[#allocation7 + $0x8] sm:$0xff] %v70
    // Predicated region
    $region18: #{tpu_custom_call.1} parent=1 // pred_check
      _
    $region19: #{tpu_custom_call.1} parent=1 // pred_check_branch
      %74 = sbr.rel (0) target = $region21
    $region20: #{tpu_custom_call.1} parent=1 // pred_region
      %76 = vsyncadd [#allocation4], 0
      %s78 = sshll.u32 [#allocation7], 4
      %s79 = int_to_ptr.vmem [resolvable:$true] %s78
      %s80 = sshll.u32 %s2, 4
      %s81 = int_to_ptr.hbm [resolvable:$true] %s80
      %83 = dma.vmem_to_hbm [thread:$0]  %s79, 256, %s81, [#allocation4]
    $region21: #{tpu_custom_call.1} parent=1 // pred_fallthru
      _
    // Predicated region
    $region22: #{tpu_custom_call.1} parent=1 // pred_check
      _
    $region23: #{tpu_custom_call.1} parent=1 // pred_check_branch
      %85 = sbr.rel (0) target = $region25
    $region24: #{tpu_custom_call.1} parent=1 // pred_region
      %87 = dma.done [#allocation4], 256
    $region25: #{tpu_custom_call.1} parent=1 // pred_fallthru
      _
    %88 = vsyncpa [#allocation3], 1
    %89 = vsyncpa [#allocation6], 1
    %90 = vsyncpa [#allocation4], 1

</llo_original>
